<compile_context>
chip_gen: v7x
topology: tpu7x:2x2x1
jax: 0.10.0
libtpu: 0.0.40
codegen_flags: <defaults>
</compile_context>

<pallas_src>
import functools

import jax
import jax.numpy as jnp
import numpy as np
from jax.experimental import pallas as pl
from jax.experimental.pallas import tpu as pltpu


def _round_up(x, m):
    return (x + m - 1) // m * m


# ---------------------------------------------------------------------------
# Phase 1: accumulate global per-column sum and sum-of-squares of y = x@W + b.
# ---------------------------------------------------------------------------
def _stats_kernel(x_ref, w_ref, b_ref, stats_ref, *, n_rows, tile_rows):
    i = pl.program_id(0)

    @pl.when(i == 0)
    def _():
        stats_ref[...] = jnp.zeros_like(stats_ref)

    # bf16 x bf16 -> f32 accumulation on the MXU.
    y = jnp.dot(x_ref[...], w_ref[...], preferred_element_type=jnp.float32)
    y = y + b_ref[...]                                        # (R, Dp) f32

    # Column sums via MXU (ones @ y) rather than an axis-0 XLU reduce.
    # Row-validity mask is baked into the ones matrix so padded rows (whose
    # y equals the bias) contribute exactly zero to the statistics.
    row_ids = i * tile_rows + jax.lax.broadcasted_iota(
        jnp.int32, (8, tile_rows), 1)
    ones = jnp.where(row_ids < n_rows, 1.0, 0.0).astype(jnp.float32)  # (8, R)

    stats_ref[0:8, :] += jnp.dot(ones, y, preferred_element_type=jnp.float32)
    stats_ref[8:16, :] += jnp.dot(ones, y * y,
                                  preferred_element_type=jnp.float32)


# ---------------------------------------------------------------------------
# Phase 2: out = (x @ W) * scale + shift   (bias/mean/gamma/beta pre-folded).
# ---------------------------------------------------------------------------
def _normalize_kernel(x_ref, w_ref, scale_ref, shift_ref, o_ref):
    y = jnp.dot(x_ref[...], w_ref[...], preferred_element_type=jnp.float32)
    o_ref[...] = y * scale_ref[...] + shift_ref[...]


@functools.partial(jax.jit, static_argnames=("eps", "row_tile"))
def linear_batchnorm(x, weight, bias, gamma, beta, *, eps=1e-5, row_tile=1024):
    """x: (N, Din); weight: (Dout, Din) (PyTorch layout); bias/gamma/beta: (Dout,)."""
    n, d_in = x.shape
    d_out = weight.shape[0]

    # Lane-dense / sublane-friendly padding.
    d_out_p = _round_up(d_out, 128)
    d_in_p = _round_up(d_in, 16)

    # Row tile: multiple of 16 (bf16 sublane pack); clamp for tiny inputs.
    # (v7x: keep ~<=2048 at Dp=128 f32 so double-buffered tiles stay well
    #  under the 32 MiB scoped VMEM default; v6e/v5e can go larger.)
    tile = min(row_tile, _round_up(n, 16))
    tile = _round_up(tile, 16)
    n_tiles = -(-n // tile)
    n_p = n_tiles * tile

    # bf16 inputs for the matmul; padding with zeros is exact (zero rows of x
    # and zero rows/cols of W contribute nothing to x@W).
    x_p = jnp.zeros((n_p, d_in_p), jnp.bfloat16).at[:n, :d_in].set(
        jnp.asarray(x, jnp.bfloat16))
    w_p = jnp.zeros((d_in_p, d_out_p), jnp.bfloat16).at[:d_in, :d_out].set(
        jnp.asarray(weight, jnp.bfloat16).T)
    b_p = jnp.zeros((1, d_out_p), jnp.float32).at[:, :d_out].set(
        jnp.asarray(bias, jnp.float32)[None, :])
    g_p = jnp.zeros((1, d_out_p), jnp.float32).at[:, :d_out].set(
        jnp.asarray(gamma, jnp.float32)[None, :])
    bt_p = jnp.zeros((1, d_out_p), jnp.float32).at[:, :d_out].set(
        jnp.asarray(beta, jnp.float32)[None, :])

    # ---- Phase 1: global column statistics (reduction axis -> "arbitrary").
    stats = pl.pallas_call(
        functools.partial(_stats_kernel, n_rows=n, tile_rows=tile),
        out_shape=jax.ShapeDtypeStruct((16, d_out_p), jnp.float32),
        grid=(n_tiles,),
        in_specs=[
            pl.BlockSpec((tile, d_in_p), lambda i: (i, 0)),     # x row tile
            pl.BlockSpec((d_in_p, d_out_p), lambda i: (0, 0)),  # W (resident)
            pl.BlockSpec((1, d_out_p), lambda i: (0, 0)),       # bias (resident)
        ],
        out_specs=pl.BlockSpec((16, d_out_p), lambda i: (0, 0)),  # accumulator
        compiler_params=pltpu.CompilerParams(
            dimension_semantics=("arbitrary",)),
    )(x_p, w_p, b_p)

    # ---- Tiny f32 affine fold (plain JAX, (Dp,) vectors):
    #   scale = gamma * rsqrt(var + eps)
    #   shift = beta + scale * (bias - mean)      (bias folded -> phase 2 skips it)
    col_sum = stats[0]
    col_sumsq = stats[8]
    mean = col_sum / n
    var = jnp.maximum(col_sumsq / n - mean * mean, 0.0)   # biased (train-mode) var
    inv_std = jax.lax.rsqrt(var + eps)
    scale = (g_p[0] * inv_std)[None, :]                   # (1, Dp)
    shift = (bt_p[0] + scale[0] * (b_p[0] - mean))[None, :]

    # ---- Phase 2: normalize; independent row tiles -> "parallel" (megacore).
    out_p = pl.pallas_call(
        _normalize_kernel,
        out_shape=jax.ShapeDtypeStruct((n_p, d_out_p), jnp.float32),
        grid=(n_tiles,),
        in_specs=[
            pl.BlockSpec((tile, d_in_p), lambda i: (i, 0)),     # x row tile
            pl.BlockSpec((d_in_p, d_out_p), lambda i: (0, 0)),  # W (resident)
            pl.BlockSpec((1, d_out_p), lambda i: (0, 0)),       # scale (resident)
            pl.BlockSpec((1, d_out_p), lambda i: (0, 0)),       # shift (resident)
        ],
        out_specs=pl.BlockSpec((tile, d_out_p), lambda i: (i, 0)),
        compiler_params=pltpu.CompilerParams(
            dimension_semantics=("parallel",)),
    )(x_p, w_p, scale, shift)

    return out_p[:n, :d_out]


class FeatureEncoderPallas:
    """Pallas re-implementation of FraudGT FeatureEncoder (homogeneous graph)."""

    def __init__(self, node_dim_in, edge_dim_in, dim_hidden, key):
        k1, k2, k3, k4 = jax.random.split(key, 4)
        # PyTorch nn.Linear default init: U(-1/sqrt(fan_in), 1/sqrt(fan_in))
        nb = 1.0 / np.sqrt(node_dim_in)
        eb = 1.0 / np.sqrt(edge_dim_in)
        self.node_w = jax.random.uniform(k1, (dim_hidden, node_dim_in),
                                         jnp.float32, -nb, nb)
        self.node_b = jax.random.uniform(k2, (dim_hidden,), jnp.float32, -nb, nb)
        self.edge_w = jax.random.uniform(k3, (dim_hidden, edge_dim_in),
                                         jnp.float32, -eb, eb)
        self.edge_b = jax.random.uniform(k4, (dim_hidden,), jnp.float32, -eb, eb)
        # BatchNorm1d default affine init: gamma=1, beta=0
        self.node_gamma = jnp.ones((dim_hidden,), jnp.float32)
        self.node_beta = jnp.zeros((dim_hidden,), jnp.float32)
        self.edge_gamma = jnp.ones((dim_hidden,), jnp.float32)
        self.edge_beta = jnp.zeros((dim_hidden,), jnp.float32)
        self.eps = 1e-5

    def __call__(self, batch, *, row_tile=1024):
        # Node and edge paths are independent (no data dependency between the
        # two call chains), so XLA is free to overlap them.
        x = linear_batchnorm(batch["x"], self.node_w, self.node_b,
                             self.node_gamma, self.node_beta,
                             eps=self.eps, row_tile=row_tile)
        edge_attr = linear_batchnorm(batch["edge_attr"], self.edge_w, self.edge_b,
                                     self.edge_gamma, self.edge_beta,
                                     eps=self.eps, row_tile=row_tile)
        return {"x": x, "edge_attr": edge_attr}


def _reference(batch, enc):
    # Same bf16-input matmul (f32 accumulation) as the kernel; BN in f32.
    def lin_bn(x, w, b, g, bt, eps):
        y = jnp.dot(jnp.asarray(x, jnp.bfloat16),
                    jnp.asarray(w, jnp.bfloat16).T,
                    preferred_element_type=jnp.float32) + b
        mean = y.mean(axis=0, keepdims=True)
        var = ((y - mean) ** 2).mean(axis=0, keepdims=True)
        return g * (y - mean) / jnp.sqrt(var + eps) + bt
    return {
        "x": lin_bn(batch["x"], enc.node_w, enc.node_b,
                    enc.node_gamma, enc.node_beta, enc.eps),
        "edge_attr": lin_bn(batch["edge_attr"], enc.edge_w, enc.edge_b,
                            enc.edge_gamma, enc.edge_beta, enc.eps),
    }


if __name__ == "__main__":
    key = jax.random.PRNGKey(0)
    k_x, k_e, k_p = jax.random.split(key, 3)

    n_nodes, node_dim_in = 16, 12
    n_edges, edge_dim_in = 24, 8
    dim_hidden = 32

    batch = {
        "x": jax.random.normal(k_x, (n_nodes, node_dim_in), jnp.float32),
        "edge_attr": jax.random.normal(k_e, (n_edges, edge_dim_in), jnp.float32),
    }

    encoder = FeatureEncoderPallas(node_dim_in, edge_dim_in, dim_hidden, k_p)

    out = encoder(batch)
    out = jax.tree_util.tree_map(jax.block_until_ready, out)

    ref = _reference(batch, encoder)
    # Tolerance accounts for bf16 matmul inputs + MXU-based stat accumulation
    # (sum/sum-of-squares) vs. the reference's two-pass f32 mean/var.
    np.testing.assert_allclose(np.asarray(out["x"]), np.asarray(ref["x"]),
                               rtol=2e-2, atol=2e-2)
    np.testing.assert_allclose(np.asarray(out["edge_attr"]),
                               np.asarray(ref["edge_attr"]),
                               rtol=2e-2, atol=2e-2)

    print("KERNEL_OK")
</pallas_src>

<mosaic_0001>
module attributes {stable_mosaic.version = 11 : i64} {
  func.func @_normalize_kernel(%arg0: i32, %arg1: memref<16x16xbf16, #tpu.memory_space<vmem>>, %arg2: memref<16x128xbf16, #tpu.memory_space<vmem>>, %arg3: memref<1x128xf32, #tpu.memory_space<vmem>>, %arg4: memref<1x128xf32, #tpu.memory_space<vmem>>, %arg5: memref<16x128xf32, #tpu.memory_space<vmem>>) attributes {dimension_semantics = [#tpu.dimension_semantics<parallel>], iteration_bounds = array<i64: 1>, scalar_prefetch = 0 : i64, scratch_operands = 0 : i64, tpu.core_type = #tpu.core_type<tc>, window_params = [{transform_indices = @transform_0, window_bounds = array<i64: 16, 16>}, {pipeline_mode = #tpu.pipeline_mode<synchronous>, transform_indices = @transform_1, window_bounds = array<i64: 16, 128>}, {pipeline_mode = #tpu.pipeline_mode<synchronous>, transform_indices = @transform_2, window_bounds = array<i64: 1, 128>}, {pipeline_mode = #tpu.pipeline_mode<synchronous>, transform_indices = @transform_3, window_bounds = array<i64: 1, 128>}, {transform_indices = @transform_4, window_bounds = array<i64: 16, 128>}]} {
    %c0 = arith.constant 0 : index
    %c0_0 = arith.constant 0 : index
    %0 = vector.load %arg1[%c0, %c0_0] : memref<16x16xbf16, #tpu.memory_space<vmem>>, vector<16x16xbf16>
    %c0_1 = arith.constant 0 : index
    %c0_2 = arith.constant 0 : index
    %1 = vector.load %arg2[%c0_1, %c0_2] : memref<16x128xbf16, #tpu.memory_space<vmem>>, vector<16x128xbf16>
    %cst = arith.constant dense<0.000000e+00> : vector<16x128xf32>
    %2 = tpu.matmul %0, %1, %cst {dimension_numbers = #tpu.dot_dimension_numbers<[1], [0], [0], [1], [0, 0, 1, 1], [], []>} : vector<16x16xbf16>, vector<16x128xbf16>, vector<16x128xf32> -> vector<16x128xf32>
    %c0_3 = arith.constant 0 : index
    %c0_4 = arith.constant 0 : index
    %3 = vector.load %arg3[%c0_3, %c0_4] : memref<1x128xf32, #tpu.memory_space<vmem>>, vector<1x128xf32>
    %4 = vector.broadcast %3 : vector<1x128xf32> to vector<16x128xf32>
    %5 = arith.mulf %2, %4 : vector<16x128xf32>
    %c0_5 = arith.constant 0 : index
    %c0_6 = arith.constant 0 : index
    %6 = vector.load %arg4[%c0_5, %c0_6] : memref<1x128xf32, #tpu.memory_space<vmem>>, vector<1x128xf32>
    %7 = vector.broadcast %6 : vector<1x128xf32> to vector<16x128xf32>
    %8 = arith.addf %5, %7 : vector<16x128xf32>
    %c0_7 = arith.constant 0 : index
    %c0_8 = arith.constant 0 : index
    %9 = vector.load %arg5[%c0_7, %c0_8] : memref<16x128xf32, #tpu.memory_space<vmem>>, vector<16x128xf32>
    tpu.vector_store %arg5[%c0_7, %c0_8], %8 {strides = array<i32>} : memref<16x128xf32, #tpu.memory_space<vmem>>, vector<16x128xf32>,
    return
  }
  func.func @transform_0(%arg0: i32) -> (i32, i32) {
    %c0_i32 = arith.constant 0 : i32
    %c0_i32_0 = arith.constant 0 : i32
    return %arg0, %c0_i32 : i32, i32
  }
  func.func @transform_1(%arg0: i32) -> (i32, i32) {
    %c0_i32 = arith.constant 0 : i32
    %c0_i32_0 = arith.constant 0 : i32
    %c0_i32_1 = arith.constant 0 : i32
    return %c0_i32, %c0_i32_0 : i32, i32
  }
  func.func @transform_2(%arg0: i32) -> (i32, i32) {
    %c0_i32 = arith.constant 0 : i32
    %c0_i32_0 = arith.constant 0 : i32
    %c0_i32_1 = arith.constant 0 : i32
    return %c0_i32, %c0_i32_0 : i32, i32
  }
  func.func @transform_3(%arg0: i32) -> (i32, i32) {
    %c0_i32 = arith.constant 0 : i32
    %c0_i32_0 = arith.constant 0 : i32
    %c0_i32_1 = arith.constant 0 : i32
    return %c0_i32, %c0_i32_0 : i32, i32
  }
  func.func @transform_4(%arg0: i32) -> (i32, i32) {
    %c0_i32 = arith.constant 0 : i32
    %c0_i32_0 = arith.constant 0 : i32
    return %arg0, %c0_i32 : i32, i32
  }
}

module attributes {stable_mosaic.version = 11 : i64} {
  func.func @_stats_kernel(%arg0: i32, %arg1: memref<16x16xbf16, #tpu.memory_space<vmem>>, %arg2: memref<16x128xbf16, #tpu.memory_space<vmem>>, %arg3: memref<1x128xf32, #tpu.memory_space<vmem>>, %arg4: memref<16x128xf32, #tpu.memory_space<vmem>>) attributes {dimension_semantics = [#tpu.dimension_semantics<arbitrary>], iteration_bounds = array<i64: 1>, scalar_prefetch = 0 : i64, scratch_operands = 0 : i64, tpu.core_type = #tpu.core_type<tc>, window_params = [{transform_indices = @transform_0, window_bounds = array<i64: 16, 16>}, {pipeline_mode = #tpu.pipeline_mode<synchronous>, transform_indices = @transform_1, window_bounds = array<i64: 16, 128>}, {pipeline_mode = #tpu.pipeline_mode<synchronous>, transform_indices = @transform_2, window_bounds = array<i64: 1, 128>}, {pipeline_mode = #tpu.pipeline_mode<synchronous>, transform_indices = @transform_3, window_bounds = array<i64: 16, 128>}]} {
    %c0_i32 = arith.constant 0 : i32
    %0 = arith.cmpi eq, %arg0, %c0_i32 : i32
    %1 = arith.extui %0 : i1 to i32
    %c0_i32_0 = arith.constant 0 : i32
    %2 = arith.cmpi ne, %1, %c0_i32_0 : i32
    scf.if %2 {
      %cst_18 = arith.constant 0.000000e+00 : f32
      %27 = vector.broadcast %cst_18 : f32 to vector<16x128xf32>
      %c0_19 = arith.constant 0 : index
      %c0_20 = arith.constant 0 : index
      %28 = vector.load %arg4[%c0_19, %c0_20] : memref<16x128xf32, #tpu.memory_space<vmem>>, vector<16x128xf32>
      tpu.vector_store %arg4[%c0_19, %c0_20], %27 {strides = array<i32>} : memref<16x128xf32, #tpu.memory_space<vmem>>, vector<16x128xf32>,
    } else {
    }
    %c0 = arith.constant 0 : index
    %c0_1 = arith.constant 0 : index
    %3 = vector.load %arg1[%c0, %c0_1] : memref<16x16xbf16, #tpu.memory_space<vmem>>, vector<16x16xbf16>
    %c0_2 = arith.constant 0 : index
    %c0_3 = arith.constant 0 : index
    %4 = vector.load %arg2[%c0_2, %c0_3] : memref<16x128xbf16, #tpu.memory_space<vmem>>, vector<16x128xbf16>
    %cst = arith.constant dense<0.000000e+00> : vector<16x128xf32>
    %5 = tpu.matmul %3, %4, %cst {dimension_numbers = #tpu.dot_dimension_numbers<[1], [0], [0], [1], [0, 0, 1, 1], [], []>} : vector<16x16xbf16>, vector<16x128xbf16>, vector<16x128xf32> -> vector<16x128xf32>
    %c0_4 = arith.constant 0 : index
    %c0_5 = arith.constant 0 : index
    %6 = vector.load %arg3[%c0_4, %c0_5] : memref<1x128xf32, #tpu.memory_space<vmem>>, vector<1x128xf32>
    %7 = vector.broadcast %6 : vector<1x128xf32> to vector<16x128xf32>
    %8 = arith.addf %5, %7 : vector<16x128xf32>
    %c16_i32 = arith.constant 16 : i32
    %9 = arith.muli %arg0, %c16_i32 : i32
    %10 = tpu.iota {dimensions = array<i32: 1>} : vector<8x16xi32>
    %11 = vector.broadcast %9 : i32 to vector<8x16xi32>
    %12 = arith.addi %11, %10 : vector<8x16xi32>
    %c16_i32_6 = arith.constant 16 : i32
    %13 = vector.broadcast %c16_i32_6 : i32 to vector<8x16xi32>
    %14 = arith.cmpi slt, %12, %13 : vector<8x16xi32>
    %cst_7 = arith.constant 1.000000e+00 : f32
    %cst_8 = arith.constant 0.000000e+00 : f32
    %15 = vector.broadcast %cst_7 : f32 to vector<8x16xf32>
    %16 = vector.broadcast %cst_8 : f32 to vector<8x16xf32>
    %17 = arith.select %14, %15, %16 : vector<8x16xi1>, vector<8x16xf32>
    %c0_9 = arith.constant 0 : index
    %c0_10 = arith.constant 0 : index
    %18 = vector.load %arg4[%c0_9, %c0_10] : memref<16x128xf32, #tpu.memory_space<vmem>>, vector<8x128xf32>
    %cst_11 = arith.constant dense<0.000000e+00> : vector<8x128xf32>
    %19 = tpu.matmul %17, %8, %cst_11 {dimension_numbers = #tpu.dot_dimension_numbers<[1], [0], [0], [1], [0, 0, 1, 1], [], []>} : vector<8x16xf32>, vector<16x128xf32>, vector<8x128xf32> -> vector<8x128xf32>
    %20 = arith.addf %18, %19 : vector<8x128xf32>
    %c0_12 = arith.constant 0 : index
    %c0_13 = arith.constant 0 : index
    %21 = vector.load %arg4[%c0_12, %c0_13] : memref<16x128xf32, #tpu.memory_space<vmem>>, vector<8x128xf32>
    tpu.vector_store %arg4[%c0_12, %c0_13], %20 {strides = array<i32>} : memref<16x128xf32, #tpu.memory_space<vmem>>, vector<8x128xf32>,
    %c8 = arith.constant 8 : index
    %c0_14 = arith.constant 0 : index
    %22 = vector.load %arg4[%c8, %c0_14] : memref<16x128xf32, #tpu.memory_space<vmem>>, vector<8x128xf32>
    %23 = arith.mulf %8, %8 : vector<16x128xf32>
    %cst_15 = arith.constant dense<0.000000e+00> : vector<8x128xf32>
    %24 = tpu.matmul %17, %23, %cst_15 {dimension_numbers = #tpu.dot_dimension_numbers<[1], [0], [0], [1], [0, 0, 1, 1], [], []>} : vector<8x16xf32>, vector<16x128xf32>, vector<8x128xf32> -> vector<8x128xf32>
    %25 = arith.addf %22, %24 : vector<8x128xf32>
    %c8_16 = arith.constant 8 : index
    %c0_17 = arith.constant 0 : index
    %26 = vector.load %arg4[%c8_16, %c0_17] : memref<16x128xf32, #tpu.memory_space<vmem>>, vector<8x128xf32>
    tpu.vector_store %arg4[%c8_16, %c0_17], %25 {strides = array<i32>} : memref<16x128xf32, #tpu.memory_space<vmem>>, vector<8x128xf32>,
    return
  }
  func.func @transform_0(%arg0: i32) -> (i32, i32) {
    %c0_i32 = arith.constant 0 : i32
    %c0_i32_0 = arith.constant 0 : i32
    return %arg0, %c0_i32 : i32, i32
  }
  func.func @transform_1(%arg0: i32) -> (i32, i32) {
    %c0_i32 = arith.constant 0 : i32
    %c0_i32_0 = arith.constant 0 : i32
    %c0_i32_1 = arith.constant 0 : i32
    return %c0_i32, %c0_i32_0 : i32, i32
  }
  func.func @transform_2(%arg0: i32) -> (i32, i32) {
    %c0_i32 = arith.constant 0 : i32
    %c0_i32_0 = arith.constant 0 : i32
    %c0_i32_1 = arith.constant 0 : i32
    return %c0_i32, %c0_i32_0 : i32, i32
  }
  func.func @transform_3(%arg0: i32) -> (i32, i32) {
    %c0_i32 = arith.constant 0 : i32
    %c0_i32_0 = arith.constant 0 : i32
    %c0_i32_1 = arith.constant 0 : i32
    return %c0_i32, %c0_i32_0 : i32, i32
  }
}

</mosaic_0001>

<llo_original>
// kernel: linear_batchnorm.3
$region0: #{linear_batchnorm.3}
  #allocation0 [shape = 'u32[]', space=smem, size = 0x4, offset = 0x4, fixed_abs, tag = 'smem constant byte address 0x4 - core index']
  #allocation1 [shape = 'u32[144,128]{1,0:T(1,128)}', space=vmem, size = 0x12000, scoped, tag = 'internal scratch']
  %s0 = inlined_call_operand.vmem [shape: bf16[16,16], index: 0, kind: input, shape index: {}]
  %s1 = inlined_call_operand.vmem [shape: bf16[16,128], index: 1, kind: input, shape index: {}]
  %s2 = inlined_call_operand.vmem [shape: f32[1,128], index: 2, kind: input, shape index: {}]
  %s3 = inlined_call_operand.vmem [shape: f32[1,128], index: 3, kind: input, shape index: {}]
  %s4 = inlined_call_operand.hbm [shape: f32[16,128], index: 4, kind: output, shape index: {}]
  %s5 = sld [smem:[#allocation0]]
  $region26: #{linear_batchnorm.3} parent=0
    _
  %s7 = ssub.s32 1, %s5
  %s8 = scalar_select 0, %s7, %s5
  $region1: #{linear_batchnorm.3} parent=0
    #allocation2 [shape = 'u8[8192]{0}', space=vmem, size = 0x2000, scoped, tag = 'output window, operand 0, single buffered']
    #allocation3 [shape = 's32[1]{0}', space=sflag, size = 0x4, scoped, tag = 'scoped memory for linear_batchnorm.3']
    %9 = vsyncpa [#allocation3], 0
    // Predicated region
    $region2: #{linear_batchnorm.3} parent=1 // pred_check
      _
    $region3: #{linear_batchnorm.3} parent=1 // pred_check_branch
      %11 = sbr.rel (0) target = $region5
    $region4: #{linear_batchnorm.3} parent=1 // pred_region
      _
    $region5: #{linear_batchnorm.3} parent=1 // pred_fallthru
      _
    // Predicated region
    $region6: #{linear_batchnorm.3} parent=1 // pred_check
      _
    $region7: #{linear_batchnorm.3} parent=1 // pred_check_branch
      %13 = sbr.rel (0) target = $region9
    $region8: #{linear_batchnorm.3} parent=1 // pred_region
      _
    $region9: #{linear_batchnorm.3} parent=1 // pred_fallthru
      _
    // Predicated region
    $region10: #{linear_batchnorm.3} parent=1 // pred_check
      _
    $region11: #{linear_batchnorm.3} parent=1 // pred_check_branch
      %15 = sbr.rel (0) target = $region13
    $region12: #{linear_batchnorm.3} parent=1 // pred_region
      _
    $region13: #{linear_batchnorm.3} parent=1 // pred_fallthru
      _
    // Predicated region
    $region14: #{linear_batchnorm.3} parent=1 // pred_check
      _
    $region15: #{linear_batchnorm.3} parent=1 // pred_check_branch
      %17 = sbr.rel (0) target = $region17
    $region16: #{linear_batchnorm.3} parent=1 // pred_region
      _
    $region17: #{linear_batchnorm.3} parent=1 // pred_fallthru
      _
    %v19 = vld [vmem:[%s0] sm:$0xf]
    %v20 = vld [vmem:[%s0 + $0x4] sm:$0xf]
    %v21 = vld [vmem:[%s1] sm:$0xf]
    %v22 = vld [vmem:[%s1 + $0x4] sm:$0xf]
    %v25 = vunpack.c.l.b16 %v19
    %v26 = vunpack.c.l.b16 %v20
    %v27 = vpack.c.b16 %v26, %v25
    %v30 = vunpack.c.l.b16 %v21
    %v31 = vunpack.c.l.b16 %v22
    %v32 = vpack.c.b16 %v31, %v30
    %vm34 = vcmask 130048
    %v36 = vsel %vm34, %v27, 0
    %38 = vmatprep.subr.bf16.mxu0 0
    %39 = vmatpush1.bf16.msra.mxu0 %v32
    %40 = vmatprep.subr.bf16.mxu0 0
    %41 = vmatpush1.bf16.msra.mxu0 0
    %42 = vmatprep.subr.bf16.mxu0 0
    %43 = vmatpush1.bf16.msra.mxu0 0
    %44 = vmatprep.subr.bf16.mxu0 0
    %45 = vmatpush1.bf16.msra.mxu0 0
    %46 = vmatprep.subr.bf16.mxu0 0
    %47 = vmatpush1.bf16.msra.mxu0 0
    %48 = vmatprep.subr.bf16.mxu0 0
    %49 = vmatpush1.bf16.msra.mxu0 0
    %50 = vmatprep.subr.bf16.mxu0 0
    %51 = vmatpush1.bf16.msra.mxu0 0
    %52 = vmatprep.subr.bf16.mxu0 0
    %53 = vmatpush1.bf16.msra.mxu0 0
    %54 = vmatprep.subr.bf16.mxu0 0
    %55 = vmatpush1.bf16.msra.mxu0 0
    %56 = vmatprep.subr.bf16.mxu0 0
    %57 = vmatpush1.bf16.msra.mxu0 0
    %58 = vmatprep.subr.bf16.mxu0 0
    %59 = vmatpush1.bf16.msra.mxu0 0
    %60 = vmatprep.subr.bf16.mxu0 0
    %61 = vmatpush1.bf16.msra.mxu0 0
    %62 = vmatprep.subr.bf16.mxu0 0
    %63 = vmatpush1.bf16.msra.mxu0 0
    %64 = vmatprep.subr.bf16.mxu0 0
    %65 = vmatpush1.bf16.msra.mxu0 0
    %66 = vmatprep.subr.bf16.mxu0 0
    %67 = vmatpush1.bf16.msra.mxu0 0
    %68 = vmatprep.subr.bf16.mxu0 0
    %69 = vmatpush1.bf16.msra.mxu0 0
    %70 = vmatprep.mubr.bf16.mxu0 0
    %71 = vmatmul.mubr.bf16.gmra.mrb[0].mxu0 %v36
    %v72 = vpop.f32.mrb[0].mxu0
    %v73 = vadd.f32 0.0, %v72
    %v74 = vpop.f32.mrb[0].mxu0
    %v75 = vpop.f32.mrb[0].mxu0
    %v76 = vadd.f32 0.0, %v75
    %v77 = vpop.f32.mrb[0].mxu0
    %78 = vdwg.mxu0
    %v79 = vld [vmem:[%s2] sm:$0x1]
    %v81 = vlaneseq
    %v82 = vshrl.u32 %v81, 7
    %v83 = vsub.s32 0, %v82
    %v84 = vrot.slane %v79, %v83
    %v86 = vmul.f32 %v73, %v84
    %v87 = vmul.f32 %v76, %v84
    %v88 = vld [vmem:[%s3] sm:$0x1]
    %v90 = vlaneseq
    %v91 = vshrl.u32 %v90, 7
    %v92 = vsub.s32 0, %v91
    %v93 = vrot.slane %v88, %v92
    %v95 = vadd.f32 %v86, %v93
    %v96 = vadd.f32 %v87, %v93
    %97 = vst [vmem:[#allocation2] sm:$0xff] %v95
    %98 = vst [vmem:[#allocation2 + $0x8] sm:$0xff] %v96
    // Predicated region
    $region18: #{linear_batchnorm.3} parent=1 // pred_check
      _
    $region19: #{linear_batchnorm.3} parent=1 // pred_check_branch
      %100 = sbr.rel (0) target = $region21
    $region20: #{linear_batchnorm.3} parent=1 // pred_region
      %s102 = ssub.s32 256, 256
      %103 = vsyncadd [#allocation3], %s102
      %s104 = sshll.u32 [#allocation2], 4
      %s105 = int_to_ptr.vmem [resolvable:$true] %s104
      %110 = dma.vmem_to_hbm [thread:$0]  %s105, 256, %s4, [#allocation3], 128, 128, 8
    $region21: #{linear_batchnorm.3} parent=1 // pred_fallthru
      _
    // Predicated region
    $region22: #{linear_batchnorm.3} parent=1 // pred_check
      _
    $region23: #{linear_batchnorm.3} parent=1 // pred_check_branch
      %112 = sbr.rel (0) target = $region25
    $region24: #{linear_batchnorm.3} parent=1 // pred_region
      %113 = dma.done [#allocation3], 256
    $region25: #{linear_batchnorm.3} parent=1 // pred_fallthru
      _
    %114 = vsyncpa [#allocation3], 1

// kernel: linear_batchnorm.2
$region0: #{linear_batchnorm.2}
  #allocation0 [shape = 'u32[]', space=smem, size = 0x4, offset = 0x4, fixed_abs, tag = 'smem constant byte address 0x4 - core index']
  #allocation1 [shape = 'u32[144,128]{1,0:T(1,128)}', space=vmem, size = 0x12000, scoped, tag = 'internal scratch']
  %s0 = inlined_call_operand.vmem [shape: bf16[16,16], index: 0, kind: input, shape index: {}]
  %s1 = inlined_call_operand.vmem [shape: bf16[16,128], index: 1, kind: input, shape index: {}]
  %s2 = inlined_call_operand.vmem [shape: f32[1,128], index: 2, kind: input, shape index: {}]
  %s3 = inlined_call_operand.vmem [shape: f32[16,128], index: 3, kind: output, shape index: {}]
  %s4 = sld [smem:[#allocation0]]
  $region26: #{linear_batchnorm.2} parent=0
    _
  %s6 = ssub.s32 1, %s4
  %s7 = scalar_select 0, %s6, %s4
  // Predicated region
  $region2: #{linear_batchnorm.2} parent=0 // pred_check
    _
  $region3: #{linear_batchnorm.2} parent=0 // pred_check_branch
    %9 = sbr.rel (0) target = $region5
  $region4: #{linear_batchnorm.2} parent=0 // pred_region
    _
  $region5: #{linear_batchnorm.2} parent=0 // pred_fallthru
    _
  // Predicated region
  $region6: #{linear_batchnorm.2} parent=0 // pred_check
    _
  $region7: #{linear_batchnorm.2} parent=0 // pred_check_branch
    %11 = sbr.rel (0) target = $region9
  $region8: #{linear_batchnorm.2} parent=0 // pred_region
    _
  $region9: #{linear_batchnorm.2} parent=0 // pred_fallthru
    _
  // Predicated region
  $region10: #{linear_batchnorm.2} parent=0 // pred_check
    _
  $region11: #{linear_batchnorm.2} parent=0 // pred_check_branch
    %13 = sbr.rel (0) target = $region13
  $region12: #{linear_batchnorm.2} parent=0 // pred_region
    _
  $region13: #{linear_batchnorm.2} parent=0 // pred_fallthru
    _
  %p15 = scmp.eq.s32.totalorder 0, 0
  // Predicated region
  $region14: #{linear_batchnorm.2} parent=0 // pred_check
    %p16 = pneg %p15
  $region15: #{linear_batchnorm.2} parent=0 // pred_check_branch
    %18 = sbr.rel (%p16) target = $region17
  $region16: #{linear_batchnorm.2} parent=0 // pred_region
    %19 = vst [vmem:[%s3] sm:$0xff] 0.0
    %20 = vst [vmem:[%s3 + $0x8] sm:$0xff] 0.0
  $region17: #{linear_batchnorm.2} parent=0 // pred_fallthru
    _
  %v21 = vld [vmem:[%s0] sm:$0xf]
  %v22 = vld [vmem:[%s0 + $0x4] sm:$0xf]
  %v23 = vld [vmem:[%s1] sm:$0xf]
  %v24 = vld [vmem:[%s1 + $0x4] sm:$0xf]
  %v25 = vld [vmem:[%s2] sm:$0x1]
  %v27 = vlaneseq
  %v28 = vshrl.u32 %v27, 7
  %v29 = vsub.s32 0, %v28
  %v30 = vrot.slane %v25, %v29
  %v34 = vunpack.c.l.b16 %v21
  %v35 = vunpack.c.l.b16 %v22
  %v36 = vpack.c.b16 %v35, %v34
  %v39 = vunpack.c.l.b16 %v23
  %v40 = vunpack.c.l.b16 %v24
  %v41 = vpack.c.b16 %v40, %v39
  %vm43 = vcmask 130048
  %v45 = vsel %vm43, %v36, 0
  %47 = vmatprep.subr.bf16.mxu0 0
  %48 = vmatpush1.bf16.msra.mxu0 %v41
  %49 = vmatprep.subr.bf16.mxu0 0
  %50 = vmatpush1.bf16.msra.mxu0 0
  %51 = vmatprep.subr.bf16.mxu0 0
  %52 = vmatpush1.bf16.msra.mxu0 0
  %53 = vmatprep.subr.bf16.mxu0 0
  %54 = vmatpush1.bf16.msra.mxu0 0
  %55 = vmatprep.subr.bf16.mxu0 0
  %56 = vmatpush1.bf16.msra.mxu0 0
  %57 = vmatprep.subr.bf16.mxu0 0
  %58 = vmatpush1.bf16.msra.mxu0 0
  %59 = vmatprep.subr.bf16.mxu0 0
  %60 = vmatpush1.bf16.msra.mxu0 0
  %61 = vmatprep.subr.bf16.mxu0 0
  %62 = vmatpush1.bf16.msra.mxu0 0
  %63 = vmatprep.subr.bf16.mxu0 0
  %64 = vmatpush1.bf16.msra.mxu0 0
  %65 = vmatprep.subr.bf16.mxu0 0
  %66 = vmatpush1.bf16.msra.mxu0 0
  %67 = vmatprep.subr.bf16.mxu0 0
  %68 = vmatpush1.bf16.msra.mxu0 0
  %69 = vmatprep.subr.bf16.mxu0 0
  %70 = vmatpush1.bf16.msra.mxu0 0
  %71 = vmatprep.subr.bf16.mxu0 0
  %72 = vmatpush1.bf16.msra.mxu0 0
  %73 = vmatprep.subr.bf16.mxu0 0
  %74 = vmatpush1.bf16.msra.mxu0 0
  %75 = vmatprep.subr.bf16.mxu0 0
  %76 = vmatpush1.bf16.msra.mxu0 0
  %77 = vmatprep.subr.bf16.mxu0 0
  %78 = vmatpush1.bf16.msra.mxu0 0
  %79 = vmatprep.mubr.bf16.mxu0 0
  %80 = vmatmul.mubr.bf16.gmra.mrb[0].mxu0 %v45
  %v81 = vpop.f32.mrb[0].mxu0
  %v82 = vadd.f32 %v30, %v81
  %v83 = vpop.f32.mrb[0].mxu0
  %v84 = vpop.f32.mrb[0].mxu0
  %v85 = vadd.f32 %v30, %v84
  %v86 = vpop.f32.mrb[0].mxu0
  %87 = vdwg.mxu0
  %s88 = smul.u32 0, 16
  %v89 = vlaneseq
  %v90 = vand.u32 %v89, 127
  %v91 = vstv %s88
  %v92 = vadd.s32 %v91, %v90
  %vm93 = vcmp.lt.s32.totalorder %v92, 16
  %v94 = vsel %vm93, 1.0, 0.0
  %v95 = vld [vmem:[%s3] sm:$0xff]
  %v97 = vsel %vm43, %v94, 0
  %99 = vmatprep.subr.mxu0 0.0
  %100 = vmatpush1.msra.mxu0 %v82
  %101 = vmatprep.subr.mxu0 0.0
  %102 = vmatpush1.msra.mxu0 %v85
  %103 = vmatprep.subr.mxu0 0.0
  %104 = vmatpush1.msra.mxu0 0.0
  %105 = vmatprep.subr.mxu0 0.0
  %106 = vmatpush1.msra.mxu0 0.0
  %107 = vmatprep.subr.mxu0 0.0
  %108 = vmatpush1.msra.mxu0 0.0
  %109 = vmatprep.subr.mxu0 0.0
  %110 = vmatpush1.msra.mxu0 0.0
  %111 = vmatprep.subr.mxu0 0.0
  %112 = vmatpush1.msra.mxu0 0.0
  %113 = vmatprep.subr.mxu0 0.0
  %114 = vmatpush1.msra.mxu0 0.0
  %115 = vmatprep.subr.mxu0 0.0
  %116 = vmatpush1.msra.mxu0 0.0
  %117 = vmatprep.subr.mxu0 0.0
  %118 = vmatpush1.msra.mxu0 0.0
  %119 = vmatprep.subr.mxu0 0.0
  %120 = vmatpush1.msra.mxu0 0.0
  %121 = vmatprep.subr.mxu0 0.0
  %122 = vmatpush1.msra.mxu0 0.0
  %123 = vmatprep.subr.mxu0 0.0
  %124 = vmatpush1.msra.mxu0 0.0
  %125 = vmatprep.subr.mxu0 0.0
  %126 = vmatpush1.msra.mxu0 0.0
  %127 = vmatprep.subr.mxu0 0.0
  %128 = vmatpush1.msra.mxu0 0.0
  %129 = vmatprep.subr.mxu0 0.0
  %130 = vmatpush1.msra.mxu0 0.0
  %131 = vmatprep.subr.mxu0 0.0
  %132 = vmatpush1.msra.mxu0 0.0
  %133 = vmatprep.subr.mxu0 0.0
  %134 = vmatpush1.msra.mxu0 0.0
  %135 = vmatprep.subr.mxu0 0.0
  %136 = vmatpush1.msra.mxu0 0.0
  %137 = vmatprep.subr.mxu0 0.0
  %138 = vmatpush1.msra.mxu0 0.0
  %139 = vmatprep.subr.mxu0 0.0
  %140 = vmatpush1.msra.mxu0 0.0
  %141 = vmatprep.subr.mxu0 0.0
  %142 = vmatpush1.msra.mxu0 0.0
  %143 = vmatprep.subr.mxu0 0.0
  %144 = vmatpush1.msra.mxu0 0.0
  %145 = vmatprep.subr.mxu0 0.0
  %146 = vmatpush1.msra.mxu0 0.0
  %147 = vmatprep.subr.mxu0 0.0
  %148 = vmatpush1.msra.mxu0 0.0
  %149 = vmatprep.subr.mxu0 0.0
  %150 = vmatpush1.msra.mxu0 0.0
  %151 = vmatprep.subr.mxu0 0.0
  %152 = vmatpush1.msra.mxu0 0.0
  %153 = vmatprep.subr.mxu0 0.0
  %154 = vmatpush1.msra.mxu0 0.0
  %155 = vmatprep.subr.mxu0 0.0
  %156 = vmatpush1.msra.mxu0 0.0
  %157 = vmatprep.subr.mxu0 0.0
  %158 = vmatpush1.msra.mxu0 0.0
  %159 = vmatprep.subr.mxu0 0.0
  %160 = vmatpush1.msra.mxu0 0.0
  %161 = vmatprep.subr.mxu0 0.0
  %162 = vmatpush1.msra.mxu0 0.0
  %163 = vmatprep.mubr.f32.mxu0 0.0
  %164 = vmatmul.mubr.f32.gmra.mrb[0].mxu0 %v97
  %v165 = vpop.f32.mrb[0].mxu0
  %v166 = vadd.f32 0.0, %v165
  %v167 = vpop.f32.mrb[0].mxu0
  %168 = vdwg.mxu0
  %v169 = vadd.f32 %v95, %v166
  %170 = vst [vmem:[%s3] sm:$0xff] %v169
  %v171 = vld [vmem:[%s3 + $0x8] sm:$0xff]
  %v172 = vmul.f32 %v82, %v82
  %v173 = vmul.f32 %v85, %v85
  %174 = vmatprep.subr.mxu0 0.0
  %175 = vmatpush1.msra.mxu0 %v172
  %176 = vmatprep.subr.mxu0 0.0
  %177 = vmatpush1.msra.mxu0 %v173
  %178 = vmatprep.subr.mxu0 0.0
  %179 = vmatpush1.msra.mxu0 0.0
  %180 = vmatprep.subr.mxu0 0.0
  %181 = vmatpush1.msra.mxu0 0.0
  %182 = vmatprep.subr.mxu0 0.0
  %183 = vmatpush1.msra.mxu0 0.0
  %184 = vmatprep.subr.mxu0 0.0
  %185 = vmatpush1.msra.mxu0 0.0
  %186 = vmatprep.subr.mxu0 0.0
  %187 = vmatpush1.msra.mxu0 0.0
  %188 = vmatprep.subr.mxu0 0.0
  %189 = vmatpush1.msra.mxu0 0.0
  %190 = vmatprep.subr.mxu0 0.0
  %191 = vmatpush1.msra.mxu0 0.0
  %192 = vmatprep.subr.mxu0 0.0
  %193 = vmatpush1.msra.mxu0 0.0
  %194 = vmatprep.subr.mxu0 0.0
  %195 = vmatpush1.msra.mxu0 0.0
  %196 = vmatprep.subr.mxu0 0.0
  %197 = vmatpush1.msra.mxu0 0.0
  %198 = vmatprep.subr.mxu0 0.0
  %199 = vmatpush1.msra.mxu0 0.0
  %200 = vmatprep.subr.mxu0 0.0
  %201 = vmatpush1.msra.mxu0 0.0
  %202 = vmatprep.subr.mxu0 0.0
  %203 = vmatpush1.msra.mxu0 0.0
  %204 = vmatprep.subr.mxu0 0.0
  %205 = vmatpush1.msra.mxu0 0.0
  %206 = vmatprep.subr.mxu0 0.0
  %207 = vmatpush1.msra.mxu0 0.0
  %208 = vmatprep.subr.mxu0 0.0
  %209 = vmatpush1.msra.mxu0 0.0
  %210 = vmatprep.subr.mxu0 0.0
  %211 = vmatpush1.msra.mxu0 0.0
  %212 = vmatprep.subr.mxu0 0.0
  %213 = vmatpush1.msra.mxu0 0.0
  %214 = vmatprep.subr.mxu0 0.0
  %215 = vmatpush1.msra.mxu0 0.0
  %216 = vmatprep.subr.mxu0 0.0
  %217 = vmatpush1.msra.mxu0 0.0
  %218 = vmatprep.subr.mxu0 0.0
  %219 = vmatpush1.msra.mxu0 0.0
  %220 = vmatprep.subr.mxu0 0.0
  %221 = vmatpush1.msra.mxu0 0.0
  %222 = vmatprep.subr.mxu0 0.0
  %223 = vmatpush1.msra.mxu0 0.0
  %224 = vmatprep.subr.mxu0 0.0
  %225 = vmatpush1.msra.mxu0 0.0
  %226 = vmatprep.subr.mxu0 0.0
  %227 = vmatpush1.msra.mxu0 0.0
  %228 = vmatprep.subr.mxu0 0.0
  %229 = vmatpush1.msra.mxu0 0.0
  %230 = vmatprep.subr.mxu0 0.0
  %231 = vmatpush1.msra.mxu0 0.0
  %232 = vmatprep.subr.mxu0 0.0
  %233 = vmatpush1.msra.mxu0 0.0
  %234 = vmatprep.subr.mxu0 0.0
  %235 = vmatpush1.msra.mxu0 0.0
  %236 = vmatprep.subr.mxu0 0.0
  %237 = vmatpush1.msra.mxu0 0.0
  %238 = vmatprep.mubr.f32.mxu0 0.0
  %239 = vmatmul.mubr.f32.gmra.mrb[0].mxu0 %v97
  %v240 = vpop.f32.mrb[0].mxu0
  %v241 = vadd.f32 0.0, %v240
  %v242 = vpop.f32.mrb[0].mxu0
  %243 = vdwg.mxu0
  %v244 = vadd.f32 %v171, %v241
  %245 = vst [vmem:[%s3 + $0x8] sm:$0xff] %v244
  // Predicated region
  $region18: #{linear_batchnorm.2} parent=0 // pred_check
    _
  $region19: #{linear_batchnorm.2} parent=0 // pred_check_branch
    %247 = sbr.rel (0) target = $region21
  $region20: #{linear_batchnorm.2} parent=0 // pred_region
    _
  $region21: #{linear_batchnorm.2} parent=0 // pred_fallthru
    _
  // Predicated region
  $region22: #{linear_batchnorm.2} parent=0 // pred_check
    _
  $region23: #{linear_batchnorm.2} parent=0 // pred_check_branch
    %249 = sbr.rel (0) target = $region25
  $region24: #{linear_batchnorm.2} parent=0 // pred_region
    _
  $region25: #{linear_batchnorm.2} parent=0 // pred_fallthru
    _

</llo_original>
